<compile_context>
chip_gen: v7x
topology: tpu7x:2x2x1
jax: 0.10.0
libtpu: 0.0.40
codegen_flags: <defaults>
</compile_context>

<pallas_src>
import math
from functools import partial

import jax
import jax.numpy as jnp
from jax import lax
from jax.experimental import pallas as pl
from jax.experimental.pallas import tpu as pltpu

LRELU_SLOPE = 0.1          # modules.LRELU_SLOPE in HiFi-GAN
VMEM_LIMIT = 32 * 1024 * 1024


def get_padding(kernel_size, dilation=1):
    return (kernel_size * dilation - dilation) // 2


def _round_up(x, m):
    return ((x + m - 1) // m) * m


# ----------------------------------------------------------------------------
# Kernel A: fused matmul + bias + leaky-ReLU.  Full-K block, no accumulator.
# Grid = (N-blocks, M-blocks); weight block index is constant in the inner M
# axis, so the weight panel is fetched once per N tile and stays in VMEM.
# ----------------------------------------------------------------------------
def _mm_bias_act_kernel(x_ref, w_ref, b_ref, o_ref, *, apply_lrelu, slope):
    y = jnp.dot(x_ref[...], w_ref[...], preferred_element_type=jnp.float32)
    y = y + b_ref[...]
    if apply_lrelu:
        y = jnp.where(y >= 0, y, y * slope)
    o_ref[...] = y.astype(o_ref.dtype)


def matmul_bias_act(x2d, w2d, b2d, apply_lrelu, slope=LRELU_SLOPE):
    """act(x2d @ w2d + b): x2d (M,K) bf16, w2d (K,N) bf16, b2d (1,N) f32 -> f32."""
    M, K = x2d.shape
    K2, N = w2d.shape
    assert K == K2 and b2d.shape == (1, N)

    # Keep K exact (full-extent block).  Only the first conv (K*Cin = 5) gets
    # rounded up to a sublane multiple of 8 -- not the old 128-pad (25x waste).
    if K % 8 != 0:
        Kp = _round_up(K, 8)
        x2d = jnp.pad(x2d, ((0, 0), (0, Kp - K)))
        w2d = jnp.pad(w2d, ((0, Kp - K), (0, 0)))
        K = Kp

    # Large M tiles (review: tm was shrinking to 8 via gcd).  jnp.pad, not
    # zeros+scatter, for the M remainder.
    tm = 256 if M >= 256 else _round_up(M, 8)
    Mp = _round_up(M, tm)
    if Mp > M:
        x2d = jnp.pad(x2d, ((0, Mp - M), (0, 0)))

    # Lane-dense output tiles; Cout=32 uses the full-extent block (no 4x pad).
    if N % 256 == 0:
        tn = 256
    elif N % 128 == 0:
        tn = 128
    else:
        tn = N

    grid = (N // tn, Mp // tm)          # N outer, M inner -> weight resident
    out = pl.pallas_call(
        partial(_mm_bias_act_kernel, apply_lrelu=apply_lrelu, slope=slope),
        out_shape=jax.ShapeDtypeStruct((Mp, N), jnp.float32),
        grid_spec=pltpu.PrefetchScalarGridSpec(
            num_scalar_prefetch=0,
            grid=grid,
            in_specs=[
                pl.BlockSpec((tm, K), lambda j, i: (i, 0)),
                pl.BlockSpec((K, tn), lambda j, i: (0, j)),    # const over i
                pl.BlockSpec((1, tn), lambda j, i: (0, j)),
            ],
            out_specs=pl.BlockSpec((tm, tn), lambda j, i: (i, j)),
        ),
        compiler_params=pltpu.CompilerParams(
            dimension_semantics=("parallel", "parallel"),
            vmem_limit_bytes=VMEM_LIMIT),
    )(x2d, w2d, b2d)
    return out[:M] if Mp > M else out


# ----------------------------------------------------------------------------
# Kernel B: direct stride-1 (K,1) conv -- no im2col.  The K taps are static
# row-shifted slices of the padded (Hp, Cin) activation slab held in VMEM.
# Grid = (Cout-blocks, B*W rows); the (K*Cin, tn) weight panel stays resident
# across the inner row sweep.
# ----------------------------------------------------------------------------
def _conv_s1_kernel(x_ref, w_ref, b_ref, o_ref, *, K, Cin, H_out,
                    apply_lrelu, slope):
    acc = jnp.zeros(o_ref.shape, jnp.float32)
    for dk in range(K):                              # taps = pure row shifts
        acc = acc + jnp.dot(
            x_ref[pl.ds(dk, H_out), :],
            w_ref[pl.ds(dk * Cin, Cin), :],
            preferred_element_type=jnp.float32)
    y = acc + b_ref[...]
    if apply_lrelu:
        y = jnp.where(y >= 0, y, y * slope)
    o_ref[...] = y.astype(o_ref.dtype)


def conv_stride1(x, w2d, b2d, K, padding, apply_lrelu):
    """Stride-1 (K,1) conv over H on (B, W, H, Cin) channels-last input."""
    B, W, H, Cin = x.shape
    Cout = w2d.shape[1]
    assert w2d.shape[0] == K * Cin
    xb = x.astype(jnp.bfloat16)
    xp = jnp.pad(xb, ((0, 0), (0, 0), (padding, padding), (0, 0)))
    Hp = H + 2 * padding
    H_out = Hp - K + 1
    R = B * W
    x3 = xp.reshape(R, Hp, Cin)

    if Cout % 256 == 0:
        tn = 256
    elif Cout % 128 == 0:
        tn = 128
    else:
        tn = Cout                                     # conv_post: Cout = 1

    grid = (Cout // tn, R)                            # Cout outer, rows inner
    out = pl.pallas_call(
        partial(_conv_s1_kernel, K=K, Cin=Cin, H_out=H_out,
                apply_lrelu=apply_lrelu, slope=LRELU_SLOPE),
        out_shape=jax.ShapeDtypeStruct((R, H_out, Cout), jnp.float32),
        grid_spec=pltpu.PrefetchScalarGridSpec(
            num_scalar_prefetch=0,
            grid=grid,
            in_specs=[
                pl.BlockSpec((None, Hp, Cin), lambda j, r: (r, 0, 0)),
                pl.BlockSpec((K * Cin, tn), lambda j, r: (0, j)),  # const in r
                pl.BlockSpec((1, tn), lambda j, r: (0, j)),
            ],
            out_specs=pl.BlockSpec((None, H_out, tn), lambda j, r: (r, 0, j)),
        ),
        compiler_params=pltpu.CompilerParams(
            dimension_semantics=("parallel", "parallel"),
            vmem_limit_bytes=VMEM_LIMIT),
    )(x3, w2d, b2d)
    return out.reshape(B, W, H_out, Cout)


# ----------------------------------------------------------------------------
# Strided (K,1)/(S,1) conv: bf16 im2col over H (XLA glue) + Kernel A.
# TODO(synk): fold the strided taps into the Pallas reduction too (phase-split
# of H) to remove this remaining ~K/stride im2col copy for the stride-3 layers.
# ----------------------------------------------------------------------------
def conv_strided(x, w2d, b2d, K, stride, padding, apply_lrelu):
    B, W, H, Cin = x.shape
    Cout = w2d.shape[1]
    assert w2d.shape[0] == K * Cin
    xb = x.astype(jnp.bfloat16)                       # halve im2col HBM traffic
    xp = jnp.pad(xb, ((0, 0), (0, 0), (padding, padding), (0, 0)))
    Hp = H + 2 * padding
    H_out = (Hp - K) // stride + 1
    patches = [xp[:, :, dk: dk + stride * (H_out - 1) + 1: stride, :]
               for dk in range(K)]
    patches = jnp.stack(patches, axis=3)              # (B, W, H_out, K, Cin)
    x2d = patches.reshape(B * W * H_out, K * Cin)
    y2d = matmul_bias_act(x2d, w2d, b2d, apply_lrelu)
    return y2d.reshape(B, W, H_out, Cout)


# ----------------------------------------------------------------------------
# Parameter init (deterministic; weight_norm reparam w = g * v / ||v||, with
# g = ||v|| as torch.nn.utils.weight_norm initializes).  Weights are packed
# to MXU-ready (K*Cin, Cout) bf16 ONCE here (no per-forward repacking).
# ----------------------------------------------------------------------------
def _weight_norm(v, g):
    norm = jnp.sqrt(jnp.sum(v * v, axis=(1, 2, 3), keepdims=True))
    return g * v / norm


def _pack_conv(w_oihw, bias):
    Cout, Cin, K, _ = w_oihw.shape
    w2d = jnp.transpose(w_oihw[..., 0], (2, 1, 0)).reshape(K * Cin, Cout)
    return dict(
        w2d=w2d.astype(jnp.bfloat16),                 # bf16 MXU inputs
        b2d=bias.reshape(1, Cout).astype(jnp.float32),
        w_oihw=w_oihw, bias=bias, K=K, Cin=Cin, Cout=Cout)


def init_params(key, kernel_size=5):
    chans = [(1, 32), (32, 128), (128, 512), (512, 1024), (1024, 1024)]
    convs = []
    for cin, cout in chans:
        key, kv, kb = jax.random.split(key, 3)
        fan_in = cin * kernel_size
        v = jax.random.normal(kv, (cout, cin, kernel_size, 1), jnp.float32) / math.sqrt(fan_in)
        g = jnp.sqrt(jnp.sum(v * v, axis=(1, 2, 3), keepdims=True))
        b = jax.random.normal(kb, (cout,), jnp.float32) / math.sqrt(fan_in)
        convs.append(_pack_conv(_weight_norm(v, g), b))
    key, kv, kb = jax.random.split(key, 3)
    cin, cout, k = 1024, 1, 3
    fan_in = cin * k
    v = jax.random.normal(kv, (cout, cin, k, 1), jnp.float32) / math.sqrt(fan_in)
    g = jnp.sqrt(jnp.sum(v * v, axis=(1, 2, 3), keepdims=True))
    b = jax.random.normal(kb, (cout,), jnp.float32) / math.sqrt(fan_in)
    post = _pack_conv(_weight_norm(v, g), b)
    return convs, post


# ----------------------------------------------------------------------------
# DiscriminatorP.forward
# ----------------------------------------------------------------------------
def discriminator_p_forward(x, params, period, kernel_size=5, stride=3):
    convs, post = params
    b, c, t = x.shape
    if t % period != 0:
        n_pad = period - t % period
        x = jnp.pad(x, ((0, 0), (0, 0), (0, n_pad)), mode="reflect")
        t = t + n_pad
    x = x.reshape(b, c, t // period, period)          # NCHW (B, 1, H, W)
    x = jnp.transpose(x, (0, 3, 2, 1))                # internal (B, W, H, C)

    fmap = []
    pad = get_padding(kernel_size, 1)
    for idx, p in enumerate(convs):
        s = stride if idx < 4 else 1
        if s == 1:
            x = conv_stride1(x, p["w2d"], p["b2d"], p["K"], pad, apply_lrelu=True)
        else:
            x = conv_strided(x, p["w2d"], p["b2d"], p["K"], s, pad, apply_lrelu=True)
        # NCHW only at the API boundary (fmap must match torch layout);
        # the activation itself stays channels-last between layers.
        fmap.append(jnp.transpose(x, (0, 3, 2, 1)))

    p = post
    x = conv_stride1(x, p["w2d"], p["b2d"], p["K"], 1, apply_lrelu=False)
    x_nchw = jnp.transpose(x, (0, 3, 2, 1))
    fmap.append(x_nchw)
    out = x_nchw.reshape(b, -1)                       # torch.flatten(x, 1, -1)
    return out, fmap


# ----------------------------------------------------------------------------
# Pure-JAX reference (lax.conv) with the same bf16-input / f32-accumulate
# numerics as the Pallas path, for correctness checking.
# ----------------------------------------------------------------------------
def _bf16_round(a):
    return a.astype(jnp.bfloat16).astype(jnp.float32)


def _conv_ref(x_nchw, w_oihw, bias, stride, padding, apply_lrelu):
    y = lax.conv_general_dilated(
        _bf16_round(x_nchw), _bf16_round(w_oihw),
        window_strides=(stride, 1),
        padding=((padding, padding), (0, 0)),
        dimension_numbers=("NCHW", "OIHW", "NCHW"))
    y = y + bias[None, :, None, None]
    if apply_lrelu:
        y = jnp.where(y >= 0, y, LRELU_SLOPE * y)
    return y


def reference_forward(x, params, period, kernel_size=5, stride=3):
    convs, post = params
    b, c, t = x.shape
    if t % period != 0:
        n_pad = period - t % period
        x = jnp.pad(x, ((0, 0), (0, 0), (0, n_pad)), mode="reflect")
        t = t + n_pad
    x = x.reshape(b, c, t // period, period)
    fmap = []
    pad = get_padding(kernel_size, 1)
    for idx, p in enumerate(convs):
        s = stride if idx < 4 else 1
        x = _conv_ref(x, p["w_oihw"], p["bias"], s, pad, True)
        fmap.append(x)
    p = post
    x = _conv_ref(x, p["w_oihw"], p["bias"], 1, 1, False)
    fmap.append(x)
    return x.reshape(b, -1), fmap


if __name__ == "__main__":
    key = jax.random.PRNGKey(0)
    key, xk = jax.random.split(key)
    period = 4
    x = jax.random.normal(xk, (2, 1, 22), jnp.float32)  # (B, C=1, T), T % period != 0
    params = init_params(key)

    out, fmap = discriminator_p_forward(x, params, period)
    out = jax.block_until_ready(out)
    fmap = [jax.block_until_ready(f) for f in fmap]

    ref_out, ref_fmap = reference_forward(x, params, period)
    assert out.shape == ref_out.shape
    assert bool(jnp.allclose(out, ref_out, rtol=1e-2, atol=1e-2))
    for f, rf in zip(fmap, ref_fmap):
        assert f.shape == rf.shape
        assert bool(jnp.allclose(f, rf, rtol=1e-2, atol=1e-2))

    print("KERNEL_OK")
</pallas_src>

<mosaic_0001>
module attributes {stable_mosaic.version = 11 : i64} {
  func.func @_mm_bias_act_kernel(%arg0: i32, %arg1: i32, %arg2: memref<16x8xbf16, #tpu.memory_space<vmem>>, %arg3: memref<8x32xbf16, #tpu.memory_space<vmem>>, %arg4: memref<1x32xf32, #tpu.memory_space<vmem>>, %arg5: memref<16x32xf32, #tpu.memory_space<vmem>>) attributes {dimension_semantics = [#tpu.dimension_semantics<parallel>, #tpu.dimension_semantics<parallel>], iteration_bounds = array<i64: 1, 1>, scalar_prefetch = 0 : i64, scratch_operands = 0 : i64, tpu.core_type = #tpu.core_type<tc>, window_params = [{transform_indices = @transform_0, window_bounds = array<i64: 16, 8>}, {transform_indices = @transform_1, window_bounds = array<i64: 8, 32>}, {transform_indices = @transform_2, window_bounds = array<i64: 1, 32>}, {transform_indices = @transform_3, window_bounds = array<i64: 16, 32>}]} {
    %c0 = arith.constant 0 : index
    %c0_0 = arith.constant 0 : index
    %0 = vector.load %arg2[%c0, %c0_0] : memref<16x8xbf16, #tpu.memory_space<vmem>>, vector<16x8xbf16>
    %c0_1 = arith.constant 0 : index
    %c0_2 = arith.constant 0 : index
    %1 = vector.load %arg3[%c0_1, %c0_2] : memref<8x32xbf16, #tpu.memory_space<vmem>>, vector<8x32xbf16>
    %cst = arith.constant dense<0.000000e+00> : vector<16x32xf32>
    %2 = tpu.matmul %0, %1, %cst {dimension_numbers = #tpu.dot_dimension_numbers<[1], [0], [0], [1], [0, 0, 1, 1], [], []>} : vector<16x8xbf16>, vector<8x32xbf16>, vector<16x32xf32> -> vector<16x32xf32>
    %c0_3 = arith.constant 0 : index
    %c0_4 = arith.constant 0 : index
    %3 = vector.load %arg4[%c0_3, %c0_4] : memref<1x32xf32, #tpu.memory_space<vmem>>, vector<1x32xf32>
    %4 = vector.broadcast %3 : vector<1x32xf32> to vector<16x32xf32>
    %5 = arith.addf %2, %4 : vector<16x32xf32>
    %cst_5 = arith.constant 0.000000e+00 : f32
    %6 = vector.broadcast %cst_5 : f32 to vector<16x32xf32>
    %7 = arith.cmpf oge, %5, %6 : vector<16x32xf32>
    %cst_6 = arith.constant 1.000000e-01 : f32
    %8 = vector.broadcast %cst_6 : f32 to vector<16x32xf32>
    %9 = arith.mulf %5, %8 : vector<16x32xf32>
    %10 = arith.select %7, %5, %9 : vector<16x32xi1>, vector<16x32xf32>
    %c0_7 = arith.constant 0 : index
    %c0_8 = arith.constant 0 : index
    %11 = vector.load %arg5[%c0_7, %c0_8] : memref<16x32xf32, #tpu.memory_space<vmem>>, vector<16x32xf32>
    tpu.vector_store %arg5[%c0_7, %c0_8], %10 {strides = array<i32>} : memref<16x32xf32, #tpu.memory_space<vmem>>, vector<16x32xf32>,
    return
  }
  func.func @transform_0(%arg0: i32, %arg1: i32) -> (i32, i32) {
    %c0_i32 = arith.constant 0 : i32
    %c0_i32_0 = arith.constant 0 : i32
    return %arg1, %c0_i32 : i32, i32
  }
  func.func @transform_1(%arg0: i32, %arg1: i32) -> (i32, i32) {
    %c0_i32 = arith.constant 0 : i32
    %c0_i32_0 = arith.constant 0 : i32
    return %c0_i32, %arg0 : i32, i32
  }
  func.func @transform_2(%arg0: i32, %arg1: i32) -> (i32, i32) {
    %c0_i32 = arith.constant 0 : i32
    %c0_i32_0 = arith.constant 0 : i32
    return %c0_i32, %arg0 : i32, i32
  }
  func.func @transform_3(%arg0: i32, %arg1: i32) -> (i32, i32) {
    %c0_i32 = arith.constant 0 : i32
    return %arg1, %arg0 : i32, i32
  }
}

</mosaic_0001>

<llo_original>
// kernel: tpu_custom_call.1
$region0: #{tpu_custom_call.1}
  #allocation0 [shape = 'u32[]', space=smem, size = 0x4, offset = 0x4, fixed_abs, tag = 'smem constant byte address 0x4 - core index']
  #allocation1 [shape = 'u32[144,128]{1,0:T(1,128)}', space=vmem, size = 0x12000, scoped, tag = 'internal scratch']
  %s0 = inlined_call_operand.vmem [shape: bf16[16,8], index: 0, kind: input, shape index: {}]
  %s1 = inlined_call_operand.vmem [shape: bf16[8,32], index: 1, kind: input, shape index: {}]
  %s2 = inlined_call_operand.vmem [shape: f32[1,32], index: 2, kind: input, shape index: {}]
  %s3 = inlined_call_operand.hbm [shape: f32[16,32], index: 3, kind: output, shape index: {}]
  %s4 = sld [smem:[#allocation0]]
  $region22: #{tpu_custom_call.1} parent=0
    _
  %s6 = ssub.s32 1, %s4
  %s7 = scalar_select 0, %s6, %s4
  $region1: #{tpu_custom_call.1} parent=0
    #allocation2 [shape = 'u8[8192]{0}', space=vmem, size = 0x2000, scoped, tag = 'output window, operand 0, single buffered']
    #allocation3 [shape = 's32[1]{0}', space=sflag, size = 0x4, scoped, tag = 'scoped memory for tpu_custom_call.1']
    %8 = vsyncpa [#allocation3], 0
    // Predicated region
    $region2: #{tpu_custom_call.1} parent=1 // pred_check
      _
    $region3: #{tpu_custom_call.1} parent=1 // pred_check_branch
      %10 = sbr.rel (0) target = $region5
    $region4: #{tpu_custom_call.1} parent=1 // pred_region
      _
    $region5: #{tpu_custom_call.1} parent=1 // pred_fallthru
      _
    // Predicated region
    $region6: #{tpu_custom_call.1} parent=1 // pred_check
      _
    $region7: #{tpu_custom_call.1} parent=1 // pred_check_branch
      %12 = sbr.rel (0) target = $region9
    $region8: #{tpu_custom_call.1} parent=1 // pred_region
      _
    $region9: #{tpu_custom_call.1} parent=1 // pred_fallthru
      _
    // Predicated region
    $region10: #{tpu_custom_call.1} parent=1 // pred_check
      _
    $region11: #{tpu_custom_call.1} parent=1 // pred_check_branch
      %14 = sbr.rel (0) target = $region13
    $region12: #{tpu_custom_call.1} parent=1 // pred_region
      _
    $region13: #{tpu_custom_call.1} parent=1 // pred_fallthru
      _
    %v16 = vld [vmem:[%s0] sm:$0xf]
    %v17 = vld [vmem:[%s0 + $0x4] sm:$0xf]
    %v18 = vld [vmem:[%s1] sm:$0xf]
    %v19 = vld [vmem:[%s2] sm:$0x1]
    %v21 = vlaneseq
    %v22 = vshrl.u32 %v21, 7
    %v23 = vsub.s32 0, %v22
    %v24 = vrot.slane %v19, %v23
    %v28 = vunpack.c.l.b16 %v16
    %v29 = vunpack.c.l.b16 %v17
    %v30 = vpack.c.b16 %v29, %v28
    %vm31 = vcmask 64512
    %v33 = vsel %vm31, %v30, 0
    %vm35 = vcmask 1043456
    %v37 = vsel %vm35, %v18, 0
    %39 = vmatprep.subr.bf16.mxu0 0
    %40 = vmatpush1.bf16.msra.mxu0 %v37
    %41 = vmatprep.subr.bf16.mxu0 0
    %42 = vmatpush1.bf16.msra.mxu0 0
    %43 = vmatprep.subr.bf16.mxu0 0
    %44 = vmatpush1.bf16.msra.mxu0 0
    %45 = vmatprep.subr.bf16.mxu0 0
    %46 = vmatpush1.bf16.msra.mxu0 0
    %47 = vmatprep.subr.bf16.mxu0 0
    %48 = vmatpush1.bf16.msra.mxu0 0
    %49 = vmatprep.subr.bf16.mxu0 0
    %50 = vmatpush1.bf16.msra.mxu0 0
    %51 = vmatprep.subr.bf16.mxu0 0
    %52 = vmatpush1.bf16.msra.mxu0 0
    %53 = vmatprep.subr.bf16.mxu0 0
    %54 = vmatpush1.bf16.msra.mxu0 0
    %55 = vmatprep.subr.bf16.mxu0 0
    %56 = vmatpush1.bf16.msra.mxu0 0
    %57 = vmatprep.subr.bf16.mxu0 0
    %58 = vmatpush1.bf16.msra.mxu0 0
    %59 = vmatprep.subr.bf16.mxu0 0
    %60 = vmatpush1.bf16.msra.mxu0 0
    %61 = vmatprep.subr.bf16.mxu0 0
    %62 = vmatpush1.bf16.msra.mxu0 0
    %63 = vmatprep.subr.bf16.mxu0 0
    %64 = vmatpush1.bf16.msra.mxu0 0
    %65 = vmatprep.subr.bf16.mxu0 0
    %66 = vmatpush1.bf16.msra.mxu0 0
    %67 = vmatprep.subr.bf16.mxu0 0
    %68 = vmatpush1.bf16.msra.mxu0 0
    %69 = vmatprep.subr.bf16.mxu0 0
    %70 = vmatpush1.bf16.msra.mxu0 0
    %71 = vmatprep.mubr.bf16.mxu0 0
    %72 = vmatmul.mubr.bf16.gmra.mrb[0].mxu0 %v33
    %v73 = vpop.f32.mrb[0].mxu0
    %v74 = vadd.f32 %v24, %v73
    %v75 = vpop.f32.mrb[0].mxu0
    %v76 = vpop.f32.mrb[0].mxu0
    %v77 = vadd.f32 %v24, %v76
    %v78 = vpop.f32.mrb[0].mxu0
    %79 = vdwg.mxu0
    %vm80 = vcmp.ge.f32.partialorder %v74, 0.0
    %vm81 = vcmp.ge.f32.partialorder %v77, 0.0
    %v82 = vmul.f32 %v74, 0.1
    %v83 = vmul.f32 %v77, 0.1
    %v84 = vsel %vm80, %v74, %v82
    %v85 = vsel %vm81, %v77, %v83
    %vm86 = vcmask 261120
    %87 = vst.msk [vmem:[#allocation2] sm:$0xff] %vm86, %v84
    %88 = vst.msk [vmem:[#allocation2 + $0x8] sm:$0xff] %vm86, %v85
    // Predicated region
    $region14: #{tpu_custom_call.1} parent=1 // pred_check
      _
    $region15: #{tpu_custom_call.1} parent=1 // pred_check_branch
      %90 = sbr.rel (0) target = $region17
    $region16: #{tpu_custom_call.1} parent=1 // pred_region
      %s92 = ssub.s32 256, 256
      %93 = vsyncadd [#allocation3], %s92
      %s94 = sshll.u32 [#allocation2], 4
      %s95 = int_to_ptr.vmem [resolvable:$true] %s94
      %100 = dma.vmem_to_hbm [thread:$0]  %s95, 256, %s3, [#allocation3], 128, 128, 8
    $region17: #{tpu_custom_call.1} parent=1 // pred_fallthru
      _
    // Predicated region
    $region18: #{tpu_custom_call.1} parent=1 // pred_check
      _
    $region19: #{tpu_custom_call.1} parent=1 // pred_check_branch
      %102 = sbr.rel (0) target = $region21
    $region20: #{tpu_custom_call.1} parent=1 // pred_region
      %103 = dma.done [#allocation3], 256
    $region21: #{tpu_custom_call.1} parent=1 // pred_fallthru
      _
    %104 = vsyncpa [#allocation3], 1

</llo_original>
